<compile_context>
chip_gen: v6e
topology: v6e:2x2x1
jax: 0.10.0
libtpu: 0.0.40
codegen_flags: <defaults>
</compile_context>

<pallas_src>
import jax
import jax.numpy as jnp
from jax.experimental import pallas as pl
from jax.experimental.pallas import tpu as pltpu

C_IN, H, W = 128, 10, 10
HW = H * W            # 100
HIDDEN = 128
BN_EPS = 1e-5
CH_SLAB = 8           # channels reduced per slab (16 slabs of 8)


def _value_head_kernel(x_ref, wc_ref, bc_ref, w1_ref, b1_ref, w2_ref, b2_ref,
                       out_ref):
    # x_ref : (TB, 128, 100) f32  channels-first activation tile (VMEM)
    # wc_ref: (128, 100)     f32  1x1-conv weight, BN folded, lane-broadcast
    # bc_ref: (1, 1)         f32  conv+BN bias                        (SMEM)
    # w1_ref: (100, 128), b1_ref: (1, 128)
    # w2_ref: (1, 128)       torch fc2 layout, contracted as trans_b on MXU
    # b2_ref: (1, 1)                                                  (SMEM)
    # out_ref: (1, 1, TB)    f32  lane-dense value row
    tb = x_ref.shape[0]

    # 1x1 conv over channels (BN pre-folded): slab-wise channel reduction so
    # the elementwise product never exists as a full (TB,128,100) VMEM temp.
    acc = jnp.zeros((tb, HW), jnp.float32)
    for g in range(C_IN // CH_SLAB):
        c0 = g * CH_SLAB
        x_slab = x_ref[:, pl.ds(c0, CH_SLAB), :]            # (TB, 8, 100)
        w_slab = wc_ref[pl.ds(c0, CH_SLAB), :]              # (8, 100)
        acc = acc + jnp.sum(x_slab * w_slab[None, :, :], axis=1)
    h = jnp.maximum(acc + bc_ref[0, 0], 0.0)                # (TB, 100)

    # fc1 on the MXU: (TB,100) @ (100,128) + b1, ReLU.
    h = jnp.dot(h, w1_ref[...], preferred_element_type=jnp.float32)
    h = jnp.maximum(h + b1_ref[...], 0.0)                   # (TB, 128)

    # fc2 + tanh, emitted lane-dense: contract hidden dims of (1,128)x(TB,128)
    # directly so the result is already a (1, TB) row.
    v = jax.lax.dot_general(
        w2_ref[...], h,
        dimension_numbers=(((1,), (1,)), ((), ())),
        preferred_element_type=jnp.float32) + b2_ref[0, 0]  # (1, TB)
    out_ref[...] = jnp.tanh(v).reshape(1, 1, tb)


def _tile_config(B):
    """Pick (TB, nb, vmem_limit_bytes) per generation and batch size."""
    try:
        vmem_bytes = pltpu.get_tpu_info().vmem_capacity_bytes
    except Exception:
        vmem_bytes = None
    if vmem_bytes is not None and vmem_bytes >= 100 * 1024 * 1024:
        tb_cap, vmem_limit = 256, 96 * 1024 * 1024     # v5e / v6e (128 MiB)
    else:
        tb_cap, vmem_limit = 128, 48 * 1024 * 1024     # v7x (64 MiB) / unknown
    if B <= 8:
        return B, 1, vmem_limit
    # Even tile count (>=2) so ("parallel",) balances both TensorCores on v7x.
    ntiles = max(2, 2 * pl.cdiv(pl.cdiv(B, tb_cap), 2))
    tb = min(tb_cap, ((pl.cdiv(B, ntiles) + 7) // 8) * 8)
    return tb, pl.cdiv(B, tb), vmem_limit


def make_params(key):
    """Parameters with the same shapes as the PyTorch module."""
    ks = jax.random.split(key, 10)
    return dict(
        conv_w=jax.random.normal(ks[0], (1, C_IN, 1, 1), jnp.float32) * 0.05,
        conv_b=jax.random.normal(ks[1], (1,), jnp.float32) * 0.05,
        bn_gamma=1.0 + 0.1 * jax.random.normal(ks[2], (1,), jnp.float32),
        bn_beta=0.1 * jax.random.normal(ks[3], (1,), jnp.float32),
        bn_mean=0.1 * jax.random.normal(ks[4], (1,), jnp.float32),
        bn_var=jax.random.uniform(ks[5], (1,), jnp.float32, 0.5, 1.5),
        fc1_w=jax.random.normal(ks[6], (HIDDEN, HW), jnp.float32) * 0.05,
        fc1_b=jax.random.normal(ks[7], (HIDDEN,), jnp.float32) * 0.05,
        fc2_w=jax.random.normal(ks[8], (1, HIDDEN), jnp.float32) * 0.05,
        fc2_b=jax.random.normal(ks[9], (1,), jnp.float32) * 0.05,
    )


def value_head(x_nchw, p):
    """x_nchw: (B, 128, 10, 10) float32 -> (B, 1) float32."""
    B = x_nchw.shape[0]
    # Free reshape (no transpose, no extra HBM pass): NCHW -> (B, C, H*W).
    # TODO(synk): if the producer can emit bf16 activations, accept them here
    #   (keep f32 accumulation) -- the kernel is HBM-read-bound on x, so bf16
    #   halves the dominant traffic; casting in this wrapper would not help.
    x = x_nchw.reshape(B, C_IN, HW).astype(jnp.float32)

    # Fold eval-mode BatchNorm2d(1) + conv bias into the 1x1 conv.
    bnscale = p["bn_gamma"][0] / jnp.sqrt(p["bn_var"][0] + BN_EPS)
    bnshift = p["bn_beta"][0] - p["bn_mean"][0] * bnscale
    wc = jnp.broadcast_to(p["conv_w"].reshape(C_IN, 1) * bnscale, (C_IN, HW))
    bc = (p["conv_b"][0] * bnscale + bnshift).reshape(1, 1)            # (1,1)
    w1 = p["fc1_w"].T                                                  # (100,128)
    b1 = p["fc1_b"].reshape(1, HIDDEN)                                 # (1,128)
    w2 = p["fc2_w"].reshape(1, HIDDEN)                                 # (1,128)
    b2 = p["fc2_b"].reshape(1, 1)                                      # (1,1)

    TB, nb, vmem_limit = _tile_config(B)

    smem = pl.BlockSpec(memory_space=pltpu.MemorySpace.SMEM)
    out = pl.pallas_call(
        _value_head_kernel,
        out_shape=jax.ShapeDtypeStruct((nb, 1, TB), jnp.float32),
        grid=(nb,),
        in_specs=[
            pl.BlockSpec((TB, C_IN, HW), lambda i: (i, 0, 0)),  # x tile (ragged OK)
            pl.BlockSpec((C_IN, HW), lambda i: (0, 0)),         # wc (VMEM-resident)
            smem,                                               # bc scalar
            pl.BlockSpec((HW, HIDDEN), lambda i: (0, 0)),       # w1 (resident)
            pl.BlockSpec((1, HIDDEN), lambda i: (0, 0)),        # b1 (resident)
            pl.BlockSpec((1, HIDDEN), lambda i: (0, 0)),        # w2 (resident)
            smem,                                               # b2 scalar
        ],
        out_specs=pl.BlockSpec((1, 1, TB), lambda i: (i, 0, 0)),  # lane-dense row
        compiler_params=pltpu.CompilerParams(
            dimension_semantics=("parallel",),
            vmem_limit_bytes=vmem_limit,
        ),
    )(x, wc, bc, w1, b1, w2, b2)
    # Rows back to (B, 1); garbage rows of the ragged last tile are sliced off.
    return out.reshape(nb * TB, 1)[:B]


def value_head_ref(x_nchw, p):
    """Pure-JAX reference mirroring the PyTorch forward (BN eval mode)."""
    B = x_nchw.shape[0]
    bnscale = p["bn_gamma"][0] / jnp.sqrt(p["bn_var"][0] + BN_EPS)
    bnshift = p["bn_beta"][0] - p["bn_mean"][0] * bnscale
    conv = jnp.einsum("bchw,c->bhw", x_nchw, p["conv_w"].reshape(C_IN))
    conv = conv + p["conv_b"][0]
    h = conv * bnscale + bnshift
    h = jnp.maximum(h, 0.0).reshape(B, HW)
    h = jnp.maximum(h @ p["fc1_w"].T + p["fc1_b"], 0.0)
    return jnp.tanh(h @ p["fc2_w"].T + p["fc2_b"])


if __name__ == "__main__":
    key = jax.random.PRNGKey(0)
    kx, kp = jax.random.split(key)
    params = make_params(kp)

    # Small single-tile batch plus a ragged multi-tile batch (exercises the
    # no-pad edge-tile path).
    for B in (2, 37):
        x = jax.random.normal(jax.random.fold_in(kx, B), (B, C_IN, H, W),
                              jnp.float32)
        out = jax.block_until_ready(value_head(x, params))
        ref = value_head_ref(x, params)
        assert out.shape == (B, 1), out.shape
        assert jnp.allclose(out, ref, atol=2e-5, rtol=1e-5), (B, out, ref)
    print("KERNEL_OK")
</pallas_src>

<mosaic_0001>
module attributes {stable_mosaic.version = 11 : i64} {
  func.func @_value_head_kernel(%arg0: i32, %arg1: memref<2x128x100xf32, #tpu.memory_space<vmem>>, %arg2: memref<128x100xf32, #tpu.memory_space<vmem>>, %arg3: memref<1x1xf32, #tpu.memory_space<smem>>, %arg4: memref<100x128xf32, #tpu.memory_space<vmem>>, %arg5: memref<1x128xf32, #tpu.memory_space<vmem>>, %arg6: memref<1x128xf32, #tpu.memory_space<vmem>>, %arg7: memref<1x1xf32, #tpu.memory_space<smem>>, %arg8: memref<1x1x2xf32, #tpu.memory_space<vmem>>) attributes {dimension_semantics = [#tpu.dimension_semantics<parallel>], iteration_bounds = array<i64: 1>, scalar_prefetch = 0 : i64, scratch_operands = 0 : i64, tpu.core_type = #tpu.core_type<tc>, window_params = [{transform_indices = @transform_0, window_bounds = array<i64: 2, 128, 100>}, {pipeline_mode = #tpu.pipeline_mode<synchronous>, transform_indices = @transform_1, window_bounds = array<i64: 128, 100>}, {transform_indices = @transform_2, window_bounds = array<i64: 1, 1>}, {pipeline_mode = #tpu.pipeline_mode<synchronous>, transform_indices = @transform_3, window_bounds = array<i64: 100, 128>}, {pipeline_mode = #tpu.pipeline_mode<synchronous>, transform_indices = @transform_4, window_bounds = array<i64: 1, 128>}, {pipeline_mode = #tpu.pipeline_mode<synchronous>, transform_indices = @transform_5, window_bounds = array<i64: 1, 128>}, {transform_indices = @transform_6, window_bounds = array<i64: 1, 1>}, {transform_indices = @transform_7, window_bounds = array<i64: 1, 1, 2>}]} {
    %cst = arith.constant 0.000000e+00 : f32
    %0 = vector.broadcast %cst : f32 to vector<2x100xf32>
    %c0 = arith.constant 0 : index
    %c0_0 = arith.constant 0 : index
    %c0_1 = arith.constant 0 : index
    %1 = vector.load %arg1[%c0, %c0_0, %c0_1] : memref<2x128x100xf32, #tpu.memory_space<vmem>>, vector<2x8x100xf32>
    %c0_2 = arith.constant 0 : index
    %c0_3 = arith.constant 0 : index
    %2 = vector.load %arg2[%c0_2, %c0_3] : memref<128x100xf32, #tpu.memory_space<vmem>>, vector<8x100xf32>
    %3 = vector.shape_cast %2 : vector<8x100xf32> to vector<1x8x100xf32>
    %4 = vector.broadcast %3 : vector<1x8x100xf32> to vector<2x8x100xf32>
    %5 = arith.mulf %1, %4 : vector<2x8x100xf32>
    %cst_4 = arith.constant dense<0.000000e+00> : vector<2x100xf32>
    %6 = vector.multi_reduction <add>, %5, %cst_4 [1] : vector<2x8x100xf32> to vector<2x100xf32>
    %7 = arith.addf %0, %6 : vector<2x100xf32>
    %c0_5 = arith.constant 0 : index
    %c8 = arith.constant 8 : index
    %c0_6 = arith.constant 0 : index
    %8 = vector.load %arg1[%c0_5, %c8, %c0_6] : memref<2x128x100xf32, #tpu.memory_space<vmem>>, vector<2x8x100xf32>
    %c8_7 = arith.constant 8 : index
    %c0_8 = arith.constant 0 : index
    %9 = vector.load %arg2[%c8_7, %c0_8] : memref<128x100xf32, #tpu.memory_space<vmem>>, vector<8x100xf32>
    %10 = vector.shape_cast %9 : vector<8x100xf32> to vector<1x8x100xf32>
    %11 = vector.broadcast %10 : vector<1x8x100xf32> to vector<2x8x100xf32>
    %12 = arith.mulf %8, %11 : vector<2x8x100xf32>
    %cst_9 = arith.constant dense<0.000000e+00> : vector<2x100xf32>
    %13 = vector.multi_reduction <add>, %12, %cst_9 [1] : vector<2x8x100xf32> to vector<2x100xf32>
    %14 = arith.addf %7, %13 : vector<2x100xf32>
    %c0_10 = arith.constant 0 : index
    %c16 = arith.constant 16 : index
    %c0_11 = arith.constant 0 : index
    %15 = vector.load %arg1[%c0_10, %c16, %c0_11] : memref<2x128x100xf32, #tpu.memory_space<vmem>>, vector<2x8x100xf32>
    %c16_12 = arith.constant 16 : index
    %c0_13 = arith.constant 0 : index
    %16 = vector.load %arg2[%c16_12, %c0_13] : memref<128x100xf32, #tpu.memory_space<vmem>>, vector<8x100xf32>
    %17 = vector.shape_cast %16 : vector<8x100xf32> to vector<1x8x100xf32>
    %18 = vector.broadcast %17 : vector<1x8x100xf32> to vector<2x8x100xf32>
    %19 = arith.mulf %15, %18 : vector<2x8x100xf32>
    %cst_14 = arith.constant dense<0.000000e+00> : vector<2x100xf32>
    %20 = vector.multi_reduction <add>, %19, %cst_14 [1] : vector<2x8x100xf32> to vector<2x100xf32>
    %21 = arith.addf %14, %20 : vector<2x100xf32>
    %c0_15 = arith.constant 0 : index
    %c24 = arith.constant 24 : index
    %c0_16 = arith.constant 0 : index
    %22 = vector.load %arg1[%c0_15, %c24, %c0_16] : memref<2x128x100xf32, #tpu.memory_space<vmem>>, vector<2x8x100xf32>
    %c24_17 = arith.constant 24 : index
    %c0_18 = arith.constant 0 : index
    %23 = vector.load %arg2[%c24_17, %c0_18] : memref<128x100xf32, #tpu.memory_space<vmem>>, vector<8x100xf32>
    %24 = vector.shape_cast %23 : vector<8x100xf32> to vector<1x8x100xf32>
    %25 = vector.broadcast %24 : vector<1x8x100xf32> to vector<2x8x100xf32>
    %26 = arith.mulf %22, %25 : vector<2x8x100xf32>
    %cst_19 = arith.constant dense<0.000000e+00> : vector<2x100xf32>
    %27 = vector.multi_reduction <add>, %26, %cst_19 [1] : vector<2x8x100xf32> to vector<2x100xf32>
    %28 = arith.addf %21, %27 : vector<2x100xf32>
    %c0_20 = arith.constant 0 : index
    %c32 = arith.constant 32 : index
    %c0_21 = arith.constant 0 : index
    %29 = vector.load %arg1[%c0_20, %c32, %c0_21] : memref<2x128x100xf32, #tpu.memory_space<vmem>>, vector<2x8x100xf32>
    %c32_22 = arith.constant 32 : index
    %c0_23 = arith.constant 0 : index
    %30 = vector.load %arg2[%c32_22, %c0_23] : memref<128x100xf32, #tpu.memory_space<vmem>>, vector<8x100xf32>
    %31 = vector.shape_cast %30 : vector<8x100xf32> to vector<1x8x100xf32>
    %32 = vector.broadcast %31 : vector<1x8x100xf32> to vector<2x8x100xf32>
    %33 = arith.mulf %29, %32 : vector<2x8x100xf32>
    %cst_24 = arith.constant dense<0.000000e+00> : vector<2x100xf32>
    %34 = vector.multi_reduction <add>, %33, %cst_24 [1] : vector<2x8x100xf32> to vector<2x100xf32>
    %35 = arith.addf %28, %34 : vector<2x100xf32>
    %c0_25 = arith.constant 0 : index
    %c40 = arith.constant 40 : index
    %c0_26 = arith.constant 0 : index
    %36 = vector.load %arg1[%c0_25, %c40, %c0_26] : memref<2x128x100xf32, #tpu.memory_space<vmem>>, vector<2x8x100xf32>
    %c40_27 = arith.constant 40 : index
    %c0_28 = arith.constant 0 : index
    %37 = vector.load %arg2[%c40_27, %c0_28] : memref<128x100xf32, #tpu.memory_space<vmem>>, vector<8x100xf32>
    %38 = vector.shape_cast %37 : vector<8x100xf32> to vector<1x8x100xf32>
    %39 = vector.broadcast %38 : vector<1x8x100xf32> to vector<2x8x100xf32>
    %40 = arith.mulf %36, %39 : vector<2x8x100xf32>
    %cst_29 = arith.constant dense<0.000000e+00> : vector<2x100xf32>
    %41 = vector.multi_reduction <add>, %40, %cst_29 [1] : vector<2x8x100xf32> to vector<2x100xf32>
    %42 = arith.addf %35, %41 : vector<2x100xf32>
    %c0_30 = arith.constant 0 : index
    %c48 = arith.constant 48 : index
    %c0_31 = arith.constant 0 : index
    %43 = vector.load %arg1[%c0_30, %c48, %c0_31] : memref<2x128x100xf32, #tpu.memory_space<vmem>>, vector<2x8x100xf32>
    %c48_32 = arith.constant 48 : index
    %c0_33 = arith.constant 0 : index
    %44 = vector.load %arg2[%c48_32, %c0_33] : memref<128x100xf32, #tpu.memory_space<vmem>>, vector<8x100xf32>
    %45 = vector.shape_cast %44 : vector<8x100xf32> to vector<1x8x100xf32>
    %46 = vector.broadcast %45 : vector<1x8x100xf32> to vector<2x8x100xf32>
    %47 = arith.mulf %43, %46 : vector<2x8x100xf32>
    %cst_34 = arith.constant dense<0.000000e+00> : vector<2x100xf32>
    %48 = vector.multi_reduction <add>, %47, %cst_34 [1] : vector<2x8x100xf32> to vector<2x100xf32>
    %49 = arith.addf %42, %48 : vector<2x100xf32>
    %c0_35 = arith.constant 0 : index
    %c56 = arith.constant 56 : index
    %c0_36 = arith.constant 0 : index
    %50 = vector.load %arg1[%c0_35, %c56, %c0_36] : memref<2x128x100xf32, #tpu.memory_space<vmem>>, vector<2x8x100xf32>
    %c56_37 = arith.constant 56 : index
    %c0_38 = arith.constant 0 : index
    %51 = vector.load %arg2[%c56_37, %c0_38] : memref<128x100xf32, #tpu.memory_space<vmem>>, vector<8x100xf32>
    %52 = vector.shape_cast %51 : vector<8x100xf32> to vector<1x8x100xf32>
    %53 = vector.broadcast %52 : vector<1x8x100xf32> to vector<2x8x100xf32>
    %54 = arith.mulf %50, %53 : vector<2x8x100xf32>
    %cst_39 = arith.constant dense<0.000000e+00> : vector<2x100xf32>
    %55 = vector.multi_reduction <add>, %54, %cst_39 [1] : vector<2x8x100xf32> to vector<2x100xf32>
    %56 = arith.addf %49, %55 : vector<2x100xf32>
    %c0_40 = arith.constant 0 : index
    %c64 = arith.constant 64 : index
    %c0_41 = arith.constant 0 : index
    %57 = vector.load %arg1[%c0_40, %c64, %c0_41] : memref<2x128x100xf32, #tpu.memory_space<vmem>>, vector<2x8x100xf32>
    %c64_42 = arith.constant 64 : index
    %c0_43 = arith.constant 0 : index
    %58 = vector.load %arg2[%c64_42, %c0_43] : memref<128x100xf32, #tpu.memory_space<vmem>>, vector<8x100xf32>
    %59 = vector.shape_cast %58 : vector<8x100xf32> to vector<1x8x100xf32>
    %60 = vector.broadcast %59 : vector<1x8x100xf32> to vector<2x8x100xf32>
    %61 = arith.mulf %57, %60 : vector<2x8x100xf32>
    %cst_44 = arith.constant dense<0.000000e+00> : vector<2x100xf32>
    %62 = vector.multi_reduction <add>, %61, %cst_44 [1] : vector<2x8x100xf32> to vector<2x100xf32>
    %63 = arith.addf %56, %62 : vector<2x100xf32>
    %c0_45 = arith.constant 0 : index
    %c72 = arith.constant 72 : index
    %c0_46 = arith.constant 0 : index
    %64 = vector.load %arg1[%c0_45, %c72, %c0_46] : memref<2x128x100xf32, #tpu.memory_space<vmem>>, vector<2x8x100xf32>
    %c72_47 = arith.constant 72 : index
    %c0_48 = arith.constant 0 : index
    %65 = vector.load %arg2[%c72_47, %c0_48] : memref<128x100xf32, #tpu.memory_space<vmem>>, vector<8x100xf32>
    %66 = vector.shape_cast %65 : vector<8x100xf32> to vector<1x8x100xf32>
    %67 = vector.broadcast %66 : vector<1x8x100xf32> to vector<2x8x100xf32>
    %68 = arith.mulf %64, %67 : vector<2x8x100xf32>
    %cst_49 = arith.constant dense<0.000000e+00> : vector<2x100xf32>
    %69 = vector.multi_reduction <add>, %68, %cst_49 [1] : vector<2x8x100xf32> to vector<2x100xf32>
    %70 = arith.addf %63, %69 : vector<2x100xf32>
    %c0_50 = arith.constant 0 : index
    %c80 = arith.constant 80 : index
    %c0_51 = arith.constant 0 : index
    %71 = vector.load %arg1[%c0_50, %c80, %c0_51] : memref<2x128x100xf32, #tpu.memory_space<vmem>>, vector<2x8x100xf32>
    %c80_52 = arith.constant 80 : index
    %c0_53 = arith.constant 0 : index
    %72 = vector.load %arg2[%c80_52, %c0_53] : memref<128x100xf32, #tpu.memory_space<vmem>>, vector<8x100xf32>
    %73 = vector.shape_cast %72 : vector<8x100xf32> to vector<1x8x100xf32>
    %74 = vector.broadcast %73 : vector<1x8x100xf32> to vector<2x8x100xf32>
    %75 = arith.mulf %71, %74 : vector<2x8x100xf32>
    %cst_54 = arith.constant dense<0.000000e+00> : vector<2x100xf32>
    %76 = vector.multi_reduction <add>, %75, %cst_54 [1] : vector<2x8x100xf32> to vector<2x100xf32>
    %77 = arith.addf %70, %76 : vector<2x100xf32>
    %c0_55 = arith.constant 0 : index
    %c88 = arith.constant 88 : index
    %c0_56 = arith.constant 0 : index
    %78 = vector.load %arg1[%c0_55, %c88, %c0_56] : memref<2x128x100xf32, #tpu.memory_space<vmem>>, vector<2x8x100xf32>
    %c88_57 = arith.constant 88 : index
    %c0_58 = arith.constant 0 : index
    %79 = vector.load %arg2[%c88_57, %c0_58] : memref<128x100xf32, #tpu.memory_space<vmem>>, vector<8x100xf32>
    %80 = vector.shape_cast %79 : vector<8x100xf32> to vector<1x8x100xf32>
    %81 = vector.broadcast %80 : vector<1x8x100xf32> to vector<2x8x100xf32>
    %82 = arith.mulf %78, %81 : vector<2x8x100xf32>
    %cst_59 = arith.constant dense<0.000000e+00> : vector<2x100xf32>
    %83 = vector.multi_reduction <add>, %82, %cst_59 [1] : vector<2x8x100xf32> to vector<2x100xf32>
    %84 = arith.addf %77, %83 : vector<2x100xf32>
    %c0_60 = arith.constant 0 : index
    %c96 = arith.constant 96 : index
    %c0_61 = arith.constant 0 : index
    %85 = vector.load %arg1[%c0_60, %c96, %c0_61] : memref<2x128x100xf32, #tpu.memory_space<vmem>>, vector<2x8x100xf32>
    %c96_62 = arith.constant 96 : index
    %c0_63 = arith.constant 0 : index
    %86 = vector.load %arg2[%c96_62, %c0_63] : memref<128x100xf32, #tpu.memory_space<vmem>>, vector<8x100xf32>
    %87 = vector.shape_cast %86 : vector<8x100xf32> to vector<1x8x100xf32>
    %88 = vector.broadcast %87 : vector<1x8x100xf32> to vector<2x8x100xf32>
    %89 = arith.mulf %85, %88 : vector<2x8x100xf32>
    %cst_64 = arith.constant dense<0.000000e+00> : vector<2x100xf32>
    %90 = vector.multi_reduction <add>, %89, %cst_64 [1] : vector<2x8x100xf32> to vector<2x100xf32>
    %91 = arith.addf %84, %90 : vector<2x100xf32>
    %c0_65 = arith.constant 0 : index
    %c104 = arith.constant 104 : index
    %c0_66 = arith.constant 0 : index
    %92 = vector.load %arg1[%c0_65, %c104, %c0_66] : memref<2x128x100xf32, #tpu.memory_space<vmem>>, vector<2x8x100xf32>
    %c104_67 = arith.constant 104 : index
    %c0_68 = arith.constant 0 : index
    %93 = vector.load %arg2[%c104_67, %c0_68] : memref<128x100xf32, #tpu.memory_space<vmem>>, vector<8x100xf32>
    %94 = vector.shape_cast %93 : vector<8x100xf32> to vector<1x8x100xf32>
    %95 = vector.broadcast %94 : vector<1x8x100xf32> to vector<2x8x100xf32>
    %96 = arith.mulf %92, %95 : vector<2x8x100xf32>
    %cst_69 = arith.constant dense<0.000000e+00> : vector<2x100xf32>
    %97 = vector.multi_reduction <add>, %96, %cst_69 [1] : vector<2x8x100xf32> to vector<2x100xf32>
    %98 = arith.addf %91, %97 : vector<2x100xf32>
    %c0_70 = arith.constant 0 : index
    %c112 = arith.constant 112 : index
    %c0_71 = arith.constant 0 : index
    %99 = vector.load %arg1[%c0_70, %c112, %c0_71] : memref<2x128x100xf32, #tpu.memory_space<vmem>>, vector<2x8x100xf32>
    %c112_72 = arith.constant 112 : index
    %c0_73 = arith.constant 0 : index
    %100 = vector.load %arg2[%c112_72, %c0_73] : memref<128x100xf32, #tpu.memory_space<vmem>>, vector<8x100xf32>
    %101 = vector.shape_cast %100 : vector<8x100xf32> to vector<1x8x100xf32>
    %102 = vector.broadcast %101 : vector<1x8x100xf32> to vector<2x8x100xf32>
    %103 = arith.mulf %99, %102 : vector<2x8x100xf32>
    %cst_74 = arith.constant dense<0.000000e+00> : vector<2x100xf32>
    %104 = vector.multi_reduction <add>, %103, %cst_74 [1] : vector<2x8x100xf32> to vector<2x100xf32>
    %105 = arith.addf %98, %104 : vector<2x100xf32>
    %c0_75 = arith.constant 0 : index
    %c120 = arith.constant 120 : index
    %c0_76 = arith.constant 0 : index
    %106 = vector.load %arg1[%c0_75, %c120, %c0_76] : memref<2x128x100xf32, #tpu.memory_space<vmem>>, vector<2x8x100xf32>
    %c120_77 = arith.constant 120 : index
    %c0_78 = arith.constant 0 : index
    %107 = vector.load %arg2[%c120_77, %c0_78] : memref<128x100xf32, #tpu.memory_space<vmem>>, vector<8x100xf32>
    %108 = vector.shape_cast %107 : vector<8x100xf32> to vector<1x8x100xf32>
    %109 = vector.broadcast %108 : vector<1x8x100xf32> to vector<2x8x100xf32>
    %110 = arith.mulf %106, %109 : vector<2x8x100xf32>
    %cst_79 = arith.constant dense<0.000000e+00> : vector<2x100xf32>
    %111 = vector.multi_reduction <add>, %110, %cst_79 [1] : vector<2x8x100xf32> to vector<2x100xf32>
    %112 = arith.addf %105, %111 : vector<2x100xf32>
    %c0_80 = arith.constant 0 : index
    %c0_81 = arith.constant 0 : index
    %113 = memref.load %arg3[%c0_80, %c0_81] : memref<1x1xf32, #tpu.memory_space<smem>>
    %114 = vector.broadcast %113 : f32 to vector<2x100xf32>
    %115 = arith.addf %112, %114 : vector<2x100xf32>
    %cst_82 = arith.constant 0.000000e+00 : f32
    %116 = vector.broadcast %cst_82 : f32 to vector<2x100xf32>
    %117 = arith.maximumf %115, %116 : vector<2x100xf32>
    %c0_83 = arith.constant 0 : index
    %c0_84 = arith.constant 0 : index
    %118 = vector.load %arg4[%c0_83, %c0_84] : memref<100x128xf32, #tpu.memory_space<vmem>>, vector<100x128xf32>
    %cst_85 = arith.constant dense<0.000000e+00> : vector<2x128xf32>
    %119 = tpu.matmul %117, %118, %cst_85 {dimension_numbers = #tpu.dot_dimension_numbers<[1], [0], [0], [1], [0, 0, 1, 1], [], []>} : vector<2x100xf32>, vector<100x128xf32>, vector<2x128xf32> -> vector<2x128xf32>
    %c0_86 = arith.constant 0 : index
    %c0_87 = arith.constant 0 : index
    %120 = vector.load %arg5[%c0_86, %c0_87] : memref<1x128xf32, #tpu.memory_space<vmem>>, vector<1x128xf32>
    %121 = vector.broadcast %120 : vector<1x128xf32> to vector<2x128xf32>
    %122 = arith.addf %119, %121 : vector<2x128xf32>
    %cst_88 = arith.constant 0.000000e+00 : f32
    %123 = vector.broadcast %cst_88 : f32 to vector<2x128xf32>
    %124 = arith.maximumf %122, %123 : vector<2x128xf32>
    %c0_89 = arith.constant 0 : index
    %c0_90 = arith.constant 0 : index
    %125 = vector.load %arg6[%c0_89, %c0_90] : memref<1x128xf32, #tpu.memory_space<vmem>>, vector<1x128xf32>
    %cst_91 = arith.constant dense<0.000000e+00> : vector<1x2xf32>
    %126 = tpu.matmul %125, %124, %cst_91 {dimension_numbers = #tpu.dot_dimension_numbers<[1], [1], [0], [0], [0, 0, 1, 0], [], []>} : vector<1x128xf32>, vector<2x128xf32>, vector<1x2xf32> -> vector<1x2xf32>
    %c0_92 = arith.constant 0 : index
    %c0_93 = arith.constant 0 : index
    %127 = memref.load %arg7[%c0_92, %c0_93] : memref<1x1xf32, #tpu.memory_space<smem>>
    %128 = vector.broadcast %127 : f32 to vector<1x2xf32>
    %129 = arith.addf %126, %128 : vector<1x2xf32>
    %130 = math.tanh %129 : vector<1x2xf32>
    %131 = vector.shape_cast %130 : vector<1x2xf32> to vector<1x1x2xf32>
    %c0_94 = arith.constant 0 : index
    %c0_95 = arith.constant 0 : index
    %c0_96 = arith.constant 0 : index
    %132 = vector.load %arg8[%c0_94, %c0_95, %c0_96] : memref<1x1x2xf32, #tpu.memory_space<vmem>>, vector<1x1x2xf32>
    tpu.vector_store %arg8[%c0_94, %c0_95, %c0_96], %131 {strides = array<i32>} : memref<1x1x2xf32, #tpu.memory_space<vmem>>, vector<1x1x2xf32>,
    return
  }
  func.func @transform_0(%arg0: i32) -> (i32, i32, i32) {
    %c0_i32 = arith.constant 0 : i32
    %c0_i32_0 = arith.constant 0 : i32
    %c0_i32_1 = arith.constant 0 : i32
    return %arg0, %c0_i32, %c0_i32_0 : i32, i32, i32
  }
  func.func @transform_1(%arg0: i32) -> (i32, i32) {
    %c0_i32 = arith.constant 0 : i32
    %c0_i32_0 = arith.constant 0 : i32
    %c0_i32_1 = arith.constant 0 : i32
    return %c0_i32, %c0_i32_0 : i32, i32
  }
  func.func @transform_2(%arg0: i32) -> (i32, i32) {
    %c0_i32 = arith.constant 0 : i32
    %c0_i32_0 = arith.constant 0 : i32
    %c0_i32_1 = arith.constant 0 : i32
    return %c0_i32, %c0_i32_0 : i32, i32
  }
  func.func @transform_3(%arg0: i32) -> (i32, i32) {
    %c0_i32 = arith.constant 0 : i32
    %c0_i32_0 = arith.constant 0 : i32
    %c0_i32_1 = arith.constant 0 : i32
    return %c0_i32, %c0_i32_0 : i32, i32
  }
  func.func @transform_4(%arg0: i32) -> (i32, i32) {
    %c0_i32 = arith.constant 0 : i32
    %c0_i32_0 = arith.constant 0 : i32
    %c0_i32_1 = arith.constant 0 : i32
    return %c0_i32, %c0_i32_0 : i32, i32
  }
  func.func @transform_5(%arg0: i32) -> (i32, i32) {
    %c0_i32 = arith.constant 0 : i32
    %c0_i32_0 = arith.constant 0 : i32
    %c0_i32_1 = arith.constant 0 : i32
    return %c0_i32, %c0_i32_0 : i32, i32
  }
  func.func @transform_6(%arg0: i32) -> (i32, i32) {
    %c0_i32 = arith.constant 0 : i32
    %c0_i32_0 = arith.constant 0 : i32
    %c0_i32_1 = arith.constant 0 : i32
    return %c0_i32, %c0_i32_0 : i32, i32
  }
  func.func @transform_7(%arg0: i32) -> (i32, i32, i32) {
    %c0_i32 = arith.constant 0 : i32
    %c0_i32_0 = arith.constant 0 : i32
    %c0_i32_1 = arith.constant 0 : i32
    return %arg0, %c0_i32, %c0_i32_0 : i32, i32, i32
  }
}

</mosaic_0001>

<llo_original>
// kernel: tpu_custom_call.1
$region0: #{tpu_custom_call.1}
  #allocation0 [shape = 'u32[]', space=smem, size = 0x4, offset = 0x4, fixed_abs, tag = 'smem constant byte address 0x4 - core index']
  #allocation1 [shape = 'u32[144,128]{1,0:T(1,128)}', space=vmem, size = 0x12000, scoped, tag = 'internal scratch']
  #allocation2 [shape = 'f32[1,1]{1,0:T(1,128)S(6)}', space=smem, size = 0x200, scoped, tag = 'scoped memory for tpu_custom_call.1']
  #allocation3 [shape = 'f32[1,1]{1,0:T(1,128)S(6)}', space=smem, size = 0x200, scoped, tag = 'scoped memory for tpu_custom_call.1']
  %s0 = inlined_call_operand.vmem [shape: f32[2,128,100], index: 0, kind: input, shape index: {}]
  %s1 = inlined_call_operand.vmem [shape: f32[128,100], index: 1, kind: input, shape index: {}]
  %s2 = inlined_call_operand.<no memory space> [shape: f32[1,1], index: 2, kind: input, shape index: {}]
  %s3 = inlined_call_operand.vmem [shape: f32[100,128], index: 3, kind: input, shape index: {}]
  %s4 = inlined_call_operand.vmem [shape: f32[1,128], index: 4, kind: input, shape index: {}]
  %s5 = inlined_call_operand.vmem [shape: f32[1,128], index: 5, kind: input, shape index: {}]
  %s6 = inlined_call_operand.<no memory space> [shape: f32[1,1], index: 6, kind: input, shape index: {}]
  %s7 = inlined_call_operand.hbm [shape: f32[1,1,2], index: 7, kind: output, shape index: {}]
  %s8 = sld [smem:[#allocation0]]
  $region38: #{tpu_custom_call.1} parent=0
    _
  %s10 = ssub.s32 1, %s8
  %s11 = scalar_select 0, %s10, %s8
  %12 = sst [smem:[#allocation2]] %s2
  %13 = sst [smem:[#allocation3]] %s6
  $region1: #{tpu_custom_call.1} parent=0
    #allocation4 [shape = 'u8[512]{0}', space=vmem, size = 0x400, scoped, tag = 'output window, operand 0, single buffered']
    #allocation5 [shape = 's32[1]{0}', space=sflag, size = 0x4, scoped, tag = 'scoped memory for tpu_custom_call.1']
    %14 = vsyncpa [#allocation5], 0
    // Predicated region
    $region2: #{tpu_custom_call.1} parent=1 // pred_check
      _
    $region3: #{tpu_custom_call.1} parent=1 // pred_check_branch
      %16 = sbr.rel (0) target = $region5
    $region4: #{tpu_custom_call.1} parent=1 // pred_region
      _
    $region5: #{tpu_custom_call.1} parent=1 // pred_fallthru
      _
    // Predicated region
    $region6: #{tpu_custom_call.1} parent=1 // pred_check
      _
    $region7: #{tpu_custom_call.1} parent=1 // pred_check_branch
      %18 = sbr.rel (0) target = $region9
    $region8: #{tpu_custom_call.1} parent=1 // pred_region
      _
    $region9: #{tpu_custom_call.1} parent=1 // pred_fallthru
      _
    // Predicated region
    $region10: #{tpu_custom_call.1} parent=1 // pred_check
      _
    $region11: #{tpu_custom_call.1} parent=1 // pred_check_branch
      %20 = sbr.rel (0) target = $region13
    $region12: #{tpu_custom_call.1} parent=1 // pred_region
      _
    $region13: #{tpu_custom_call.1} parent=1 // pred_fallthru
      _
    // Predicated region
    $region14: #{tpu_custom_call.1} parent=1 // pred_check
      _
    $region15: #{tpu_custom_call.1} parent=1 // pred_check_branch
      %22 = sbr.rel (0) target = $region17
    $region16: #{tpu_custom_call.1} parent=1 // pred_region
      _
    $region17: #{tpu_custom_call.1} parent=1 // pred_fallthru
      _
    // Predicated region
    $region18: #{tpu_custom_call.1} parent=1 // pred_check
      _
    $region19: #{tpu_custom_call.1} parent=1 // pred_check_branch
      %24 = sbr.rel (0) target = $region21
    $region20: #{tpu_custom_call.1} parent=1 // pred_region
      _
    $region21: #{tpu_custom_call.1} parent=1 // pred_fallthru
      _
    // Predicated region
    $region22: #{tpu_custom_call.1} parent=1 // pred_check
      _
    $region23: #{tpu_custom_call.1} parent=1 // pred_check_branch
      %26 = sbr.rel (0) target = $region25
    $region24: #{tpu_custom_call.1} parent=1 // pred_region
      _
    $region25: #{tpu_custom_call.1} parent=1 // pred_fallthru
      _
    // Predicated region
    $region26: #{tpu_custom_call.1} parent=1 // pred_check
      _
    $region27: #{tpu_custom_call.1} parent=1 // pred_check_branch
      %28 = sbr.rel (0) target = $region29
    $region28: #{tpu_custom_call.1} parent=1 // pred_region
      _
    $region29: #{tpu_custom_call.1} parent=1 // pred_fallthru
      _
    %v29 = vld [vmem:[%s0] sm:$0xff]
    %v30 = vld [vmem:[%s0 + $0x80] sm:$0xff]
    %v31 = vld [vmem:[%s1] sm:$0xff]
    %v32 = vmul.f32 %v29, %v31
    %v33 = vmul.f32 %v30, %v31
    %vm34 = vcmask 818176
    %v35 = vsel %vm34, %v32, 0.0
    %v36 = vrot.slane %v35, 4
    %v37 = vadd.f32 %v35, %v36
    %v38 = vrot.slane %v37, 2
    %v39 = vadd.f32 %v37, %v38
    %v40 = vrot.slane %v39, 1
    %v41 = vadd.f32 %v39, %v40
    %v42 = vsel %vm34, %v33, 0.0
    %v43 = vrot.slane %v42, 4
    %v44 = vadd.f32 %v42, %v43
    %v45 = vrot.slane %v44, 2
    %v46 = vadd.f32 %v44, %v45
    %v47 = vrot.slane %v46, 1
    %v48 = vadd.f32 %v46, %v47
    %v49 = vadd.f32 %v41, 0.0
    %v50 = vadd.f32 %v48, 0.0
    %v51 = vld [vmem:[%s0 + $0x8] sm:$0xff]
    %v52 = vld [vmem:[%s0 + $0x88] sm:$0xff]
    %v53 = vld [vmem:[%s1 + $0x8] sm:$0xff]
    %v54 = vmul.f32 %v51, %v53
    %v55 = vmul.f32 %v52, %v53
    %v56 = vsel %vm34, %v54, 0.0
    %v57 = vrot.slane %v56, 4
    %v58 = vadd.f32 %v56, %v57
    %v59 = vrot.slane %v58, 2
    %v60 = vadd.f32 %v58, %v59
    %v61 = vrot.slane %v60, 1
    %v62 = vadd.f32 %v60, %v61
    %v63 = vsel %vm34, %v55, 0.0
    %v64 = vrot.slane %v63, 4
    %v65 = vadd.f32 %v63, %v64
    %v66 = vrot.slane %v65, 2
    %v67 = vadd.f32 %v65, %v66
    %v68 = vrot.slane %v67, 1
    %v69 = vadd.f32 %v67, %v68
    %v70 = vadd.f32 %v49, %v62
    %v71 = vadd.f32 %v50, %v69
    %v72 = vld [vmem:[%s0 + $0x10] sm:$0xff]
    %v73 = vld [vmem:[%s0 + $0x90] sm:$0xff]
    %v74 = vld [vmem:[%s1 + $0x10] sm:$0xff]
    %v75 = vmul.f32 %v72, %v74
    %v76 = vmul.f32 %v73, %v74
    %v77 = vsel %vm34, %v75, 0.0
    %v78 = vrot.slane %v77, 4
    %v79 = vadd.f32 %v77, %v78
    %v80 = vrot.slane %v79, 2
    %v81 = vadd.f32 %v79, %v80
    %v82 = vrot.slane %v81, 1
    %v83 = vadd.f32 %v81, %v82
    %v84 = vsel %vm34, %v76, 0.0
    %v85 = vrot.slane %v84, 4
    %v86 = vadd.f32 %v84, %v85
    %v87 = vrot.slane %v86, 2
    %v88 = vadd.f32 %v86, %v87
    %v89 = vrot.slane %v88, 1
    %v90 = vadd.f32 %v88, %v89
    %v91 = vadd.f32 %v70, %v83
    %v92 = vadd.f32 %v71, %v90
    %v93 = vld [vmem:[%s0 + $0x18] sm:$0xff]
    %v94 = vld [vmem:[%s0 + $0x98] sm:$0xff]
    %v95 = vld [vmem:[%s1 + $0x18] sm:$0xff]
    %v96 = vmul.f32 %v93, %v95
    %v97 = vmul.f32 %v94, %v95
    %v98 = vsel %vm34, %v96, 0.0
    %v99 = vrot.slane %v98, 4
    %v100 = vadd.f32 %v98, %v99
    %v101 = vrot.slane %v100, 2
    %v102 = vadd.f32 %v100, %v101
    %v103 = vrot.slane %v102, 1
    %v104 = vadd.f32 %v102, %v103
    %v105 = vsel %vm34, %v97, 0.0
    %v106 = vrot.slane %v105, 4
    %v107 = vadd.f32 %v105, %v106
    %v108 = vrot.slane %v107, 2
    %v109 = vadd.f32 %v107, %v108
    %v110 = vrot.slane %v109, 1
    %v111 = vadd.f32 %v109, %v110
    %v112 = vadd.f32 %v91, %v104
    %v113 = vadd.f32 %v92, %v111
    %v114 = vld [vmem:[%s0 + $0x20] sm:$0xff]
    %v115 = vld [vmem:[%s0 + $0xa0] sm:$0xff]
    %v116 = vld [vmem:[%s1 + $0x20] sm:$0xff]
    %v117 = vmul.f32 %v114, %v116
    %v118 = vmul.f32 %v115, %v116
    %v119 = vsel %vm34, %v117, 0.0
    %v120 = vrot.slane %v119, 4
    %v121 = vadd.f32 %v119, %v120
    %v122 = vrot.slane %v121, 2
    %v123 = vadd.f32 %v121, %v122
    %v124 = vrot.slane %v123, 1
    %v125 = vadd.f32 %v123, %v124
    %v126 = vsel %vm34, %v118, 0.0
    %v127 = vrot.slane %v126, 4
    %v128 = vadd.f32 %v126, %v127
    %v129 = vrot.slane %v128, 2
    %v130 = vadd.f32 %v128, %v129
    %v131 = vrot.slane %v130, 1
    %v132 = vadd.f32 %v130, %v131
    %v133 = vadd.f32 %v112, %v125
    %v134 = vadd.f32 %v113, %v132
    %v135 = vld [vmem:[%s0 + $0x28] sm:$0xff]
    %v136 = vld [vmem:[%s0 + $0xa8] sm:$0xff]
    %v137 = vld [vmem:[%s1 + $0x28] sm:$0xff]
    %v138 = vmul.f32 %v135, %v137
    %v139 = vmul.f32 %v136, %v137
    %v140 = vsel %vm34, %v138, 0.0
    %v141 = vrot.slane %v140, 4
    %v142 = vadd.f32 %v140, %v141
    %v143 = vrot.slane %v142, 2
    %v144 = vadd.f32 %v142, %v143
    %v145 = vrot.slane %v144, 1
    %v146 = vadd.f32 %v144, %v145
    %v147 = vsel %vm34, %v139, 0.0
    %v148 = vrot.slane %v147, 4
    %v149 = vadd.f32 %v147, %v148
    %v150 = vrot.slane %v149, 2
    %v151 = vadd.f32 %v149, %v150
    %v152 = vrot.slane %v151, 1
    %v153 = vadd.f32 %v151, %v152
    %v154 = vadd.f32 %v133, %v146
    %v155 = vadd.f32 %v134, %v153
    %v156 = vld [vmem:[%s0 + $0x30] sm:$0xff]
    %v157 = vld [vmem:[%s0 + $0xb0] sm:$0xff]
    %v158 = vld [vmem:[%s1 + $0x30] sm:$0xff]
    %v159 = vmul.f32 %v156, %v158
    %v160 = vmul.f32 %v157, %v158
    %v161 = vsel %vm34, %v159, 0.0
    %v162 = vrot.slane %v161, 4
    %v163 = vadd.f32 %v161, %v162
    %v164 = vrot.slane %v163, 2
    %v165 = vadd.f32 %v163, %v164
    %v166 = vrot.slane %v165, 1
    %v167 = vadd.f32 %v165, %v166
    %v168 = vsel %vm34, %v160, 0.0
    %v169 = vrot.slane %v168, 4
    %v170 = vadd.f32 %v168, %v169
    %v171 = vrot.slane %v170, 2
    %v172 = vadd.f32 %v170, %v171
    %v173 = vrot.slane %v172, 1
    %v174 = vadd.f32 %v172, %v173
    %v175 = vadd.f32 %v154, %v167
    %v176 = vadd.f32 %v155, %v174
    %v177 = vld [vmem:[%s0 + $0x38] sm:$0xff]
    %v178 = vld [vmem:[%s0 + $0xb8] sm:$0xff]
    %v179 = vld [vmem:[%s1 + $0x38] sm:$0xff]
    %v180 = vmul.f32 %v177, %v179
    %v181 = vmul.f32 %v178, %v179
    %v182 = vsel %vm34, %v180, 0.0
    %v183 = vrot.slane %v182, 4
    %v184 = vadd.f32 %v182, %v183
    %v185 = vrot.slane %v184, 2
    %v186 = vadd.f32 %v184, %v185
    %v187 = vrot.slane %v186, 1
    %v188 = vadd.f32 %v186, %v187
    %v189 = vsel %vm34, %v181, 0.0
    %v190 = vrot.slane %v189, 4
    %v191 = vadd.f32 %v189, %v190
    %v192 = vrot.slane %v191, 2
    %v193 = vadd.f32 %v191, %v192
    %v194 = vrot.slane %v193, 1
    %v195 = vadd.f32 %v193, %v194
    %v196 = vadd.f32 %v175, %v188
    %v197 = vadd.f32 %v176, %v195
    %v198 = vld [vmem:[%s0 + $0x40] sm:$0xff]
    %v199 = vld [vmem:[%s0 + $0xc0] sm:$0xff]
    %v200 = vld [vmem:[%s1 + $0x40] sm:$0xff]
    %v201 = vmul.f32 %v198, %v200
    %v202 = vmul.f32 %v199, %v200
    %v203 = vsel %vm34, %v201, 0.0
    %v204 = vrot.slane %v203, 4
    %v205 = vadd.f32 %v203, %v204
    %v206 = vrot.slane %v205, 2
    %v207 = vadd.f32 %v205, %v206
    %v208 = vrot.slane %v207, 1
    %v209 = vadd.f32 %v207, %v208
    %v210 = vsel %vm34, %v202, 0.0
    %v211 = vrot.slane %v210, 4
    %v212 = vadd.f32 %v210, %v211
    %v213 = vrot.slane %v212, 2
    %v214 = vadd.f32 %v212, %v213
    %v215 = vrot.slane %v214, 1
    %v216 = vadd.f32 %v214, %v215
    %v217 = vadd.f32 %v196, %v209
    %v218 = vadd.f32 %v197, %v216
    %v219 = vld [vmem:[%s0 + $0x48] sm:$0xff]
    %v220 = vld [vmem:[%s0 + $0xc8] sm:$0xff]
    %v221 = vld [vmem:[%s1 + $0x48] sm:$0xff]
    %v222 = vmul.f32 %v219, %v221
    %v223 = vmul.f32 %v220, %v221
    %v224 = vsel %vm34, %v222, 0.0
    %v225 = vrot.slane %v224, 4
    %v226 = vadd.f32 %v224, %v225
    %v227 = vrot.slane %v226, 2
    %v228 = vadd.f32 %v226, %v227
    %v229 = vrot.slane %v228, 1
    %v230 = vadd.f32 %v228, %v229
    %v231 = vsel %vm34, %v223, 0.0
    %v232 = vrot.slane %v231, 4
    %v233 = vadd.f32 %v231, %v232
    %v234 = vrot.slane %v233, 2
    %v235 = vadd.f32 %v233, %v234
    %v236 = vrot.slane %v235, 1
    %v237 = vadd.f32 %v235, %v236
    %v238 = vadd.f32 %v217, %v230
    %v239 = vadd.f32 %v218, %v237
    %v240 = vld [vmem:[%s0 + $0x50] sm:$0xff]
    %v241 = vld [vmem:[%s0 + $0xd0] sm:$0xff]
    %v242 = vld [vmem:[%s1 + $0x50] sm:$0xff]
    %v243 = vmul.f32 %v240, %v242
    %v244 = vmul.f32 %v241, %v242
    %v245 = vsel %vm34, %v243, 0.0
    %v246 = vrot.slane %v245, 4
    %v247 = vadd.f32 %v245, %v246
    %v248 = vrot.slane %v247, 2
    %v249 = vadd.f32 %v247, %v248
    %v250 = vrot.slane %v249, 1
    %v251 = vadd.f32 %v249, %v250
    %v252 = vsel %vm34, %v244, 0.0
    %v253 = vrot.slane %v252, 4
    %v254 = vadd.f32 %v252, %v253
    %v255 = vrot.slane %v254, 2
    %v256 = vadd.f32 %v254, %v255
    %v257 = vrot.slane %v256, 1
    %v258 = vadd.f32 %v256, %v257
    %v259 = vadd.f32 %v238, %v251
    %v260 = vadd.f32 %v239, %v258
    %v261 = vld [vmem:[%s0 + $0x58] sm:$0xff]
    %v262 = vld [vmem:[%s0 + $0xd8] sm:$0xff]
    %v263 = vld [vmem:[%s1 + $0x58] sm:$0xff]
    %v264 = vmul.f32 %v261, %v263
    %v265 = vmul.f32 %v262, %v263
    %v266 = vsel %vm34, %v264, 0.0
    %v267 = vrot.slane %v266, 4
    %v268 = vadd.f32 %v266, %v267
    %v269 = vrot.slane %v268, 2
    %v270 = vadd.f32 %v268, %v269
    %v271 = vrot.slane %v270, 1
    %v272 = vadd.f32 %v270, %v271
    %v273 = vsel %vm34, %v265, 0.0
    %v274 = vrot.slane %v273, 4
    %v275 = vadd.f32 %v273, %v274
    %v276 = vrot.slane %v275, 2
    %v277 = vadd.f32 %v275, %v276
    %v278 = vrot.slane %v277, 1
    %v279 = vadd.f32 %v277, %v278
    %v280 = vadd.f32 %v259, %v272
    %v281 = vadd.f32 %v260, %v279
    %v282 = vld [vmem:[%s0 + $0x60] sm:$0xff]
    %v283 = vld [vmem:[%s0 + $0xe0] sm:$0xff]
    %v284 = vld [vmem:[%s1 + $0x60] sm:$0xff]
    %v285 = vmul.f32 %v282, %v284
    %v286 = vmul.f32 %v283, %v284
    %v287 = vsel %vm34, %v285, 0.0
    %v288 = vrot.slane %v287, 4
    %v289 = vadd.f32 %v287, %v288
    %v290 = vrot.slane %v289, 2
    %v291 = vadd.f32 %v289, %v290
    %v292 = vrot.slane %v291, 1
    %v293 = vadd.f32 %v291, %v292
    %v294 = vsel %vm34, %v286, 0.0
    %v295 = vrot.slane %v294, 4
    %v296 = vadd.f32 %v294, %v295
    %v297 = vrot.slane %v296, 2
    %v298 = vadd.f32 %v296, %v297
    %v299 = vrot.slane %v298, 1
    %v300 = vadd.f32 %v298, %v299
    %v301 = vadd.f32 %v280, %v293
    %v302 = vadd.f32 %v281, %v300
    %v303 = vld [vmem:[%s0 + $0x68] sm:$0xff]
    %v304 = vld [vmem:[%s0 + $0xe8] sm:$0xff]
    %v305 = vld [vmem:[%s1 + $0x68] sm:$0xff]
    %v306 = vmul.f32 %v303, %v305
    %v307 = vmul.f32 %v304, %v305
    %v308 = vsel %vm34, %v306, 0.0
    %v309 = vrot.slane %v308, 4
    %v310 = vadd.f32 %v308, %v309
    %v311 = vrot.slane %v310, 2
    %v312 = vadd.f32 %v310, %v311
    %v313 = vrot.slane %v312, 1
    %v314 = vadd.f32 %v312, %v313
    %v315 = vsel %vm34, %v307, 0.0
    %v316 = vrot.slane %v315, 4
    %v317 = vadd.f32 %v315, %v316
    %v318 = vrot.slane %v317, 2
    %v319 = vadd.f32 %v317, %v318
    %v320 = vrot.slane %v319, 1
    %v321 = vadd.f32 %v319, %v320
    %v322 = vadd.f32 %v301, %v314
    %v323 = vadd.f32 %v302, %v321
    %v324 = vld [vmem:[%s0 + $0x70] sm:$0xff]
    %v325 = vld [vmem:[%s0 + $0xf0] sm:$0xff]
    %v326 = vld [vmem:[%s1 + $0x70] sm:$0xff]
    %v327 = vmul.f32 %v324, %v326
    %v328 = vmul.f32 %v325, %v326
    %v329 = vsel %vm34, %v327, 0.0
    %v330 = vrot.slane %v329, 4
    %v331 = vadd.f32 %v329, %v330
    %v332 = vrot.slane %v331, 2
    %v333 = vadd.f32 %v331, %v332
    %v334 = vrot.slane %v333, 1
    %v335 = vadd.f32 %v333, %v334
    %v336 = vsel %vm34, %v328, 0.0
    %v337 = vrot.slane %v336, 4
    %v338 = vadd.f32 %v336, %v337
    %v339 = vrot.slane %v338, 2
    %v340 = vadd.f32 %v338, %v339
    %v341 = vrot.slane %v340, 1
    %v342 = vadd.f32 %v340, %v341
    %v343 = vadd.f32 %v322, %v335
    %v344 = vadd.f32 %v323, %v342
    %v345 = vld [vmem:[%s0 + $0x78] sm:$0xff]
    %v346 = vld [vmem:[%s0 + $0xf8] sm:$0xff]
    %v347 = vld [vmem:[%s1 + $0x78] sm:$0xff]
    %v348 = vmul.f32 %v345, %v347
    %v349 = vmul.f32 %v346, %v347
    %v350 = vsel %vm34, %v348, 0.0
    %v351 = vrot.slane %v350, 4
    %v352 = vadd.f32 %v350, %v351
    %v353 = vrot.slane %v352, 2
    %v354 = vadd.f32 %v352, %v353
    %v355 = vrot.slane %v354, 1
    %v356 = vadd.f32 %v354, %v355
    %v357 = vsel %vm34, %v349, 0.0
    %v358 = vrot.slane %v357, 4
    %v359 = vadd.f32 %v357, %v358
    %v360 = vrot.slane %v359, 2
    %v361 = vadd.f32 %v359, %v360
    %v362 = vrot.slane %v361, 1
    %v363 = vadd.f32 %v361, %v362
    %v364 = vadd.f32 %v343, %v356
    %v365 = vadd.f32 %v344, %v363
    %s366 = sld [smem:[#allocation2]]
    %v367 = vstv %s366
    %v368 = vadd.f32 %v364, %v367
    %v369 = vadd.f32 %v365, %v367
    %v370 = vmax.f32 %v368, 0.0
    %v371 = vmax.f32 %v369, 0.0
    %v372 = vld [vmem:[%s3] sm:$0xff]
    %v373 = vld [vmem:[%s3 + $0x8] sm:$0xff]
    %v374 = vld [vmem:[%s3 + $0x10] sm:$0xff]
    %v375 = vld [vmem:[%s3 + $0x18] sm:$0xff]
    %v376 = vld [vmem:[%s3 + $0x20] sm:$0xff]
    %v377 = vld [vmem:[%s3 + $0x28] sm:$0xff]
    %v378 = vld [vmem:[%s3 + $0x30] sm:$0xff]
    %v379 = vld [vmem:[%s3 + $0x38] sm:$0xff]
    %v380 = vld [vmem:[%s3 + $0x40] sm:$0xff]
    %v381 = vld [vmem:[%s3 + $0x48] sm:$0xff]
    %v382 = vld [vmem:[%s3 + $0x50] sm:$0xff]
    %v383 = vld [vmem:[%s3 + $0x58] sm:$0xff]
    %v384 = vld [vmem:[%s3 + $0x60] sm:$0xf]
    %v385 = vld [vmem:[%s4] sm:$0x1]
    %v387 = vlaneseq
    %v388 = vshrl.u32 %v387, 7
    %v389 = vsub.s32 0, %v388
    %v390 = vrot.slane %v385, %v389
    %vm394 = vcmask 1041409
    %v395 = vsel %vm394, %v371, %v370
    %v396 = vsel %vm34, %v395, 0
    %vm398 = vcmask 1043456
    %v400 = vsel %vm398, %v384, 0
    %402 = vmatprep.subr.mxu0 0.0
    %403 = vmatpush1.msra.mxu0 0.0
    %404 = vmatprep.subr.mxu0 0.0
    %405 = vmatpush1.msra.mxu0 0.0
    %406 = vmatprep.subr.mxu0 0.0
    %407 = vmatpush1.msra.mxu0 0.0
    %408 = vmatprep.subr.mxu0 0.0
    %409 = vmatpush1.msra.mxu0 %v400
    %410 = vmatprep.subr.mxu0 0.0
    %411 = vmatpush1.msra.mxu0 %v383
    %412 = vmatprep.subr.mxu0 0.0
    %413 = vmatpush1.msra.mxu0 %v382
    %414 = vmatprep.subr.mxu0 0.0
    %415 = vmatpush1.msra.mxu0 %v381
    %416 = vmatprep.subr.mxu0 0.0
    %417 = vmatpush1.msra.mxu0 %v380
    %418 = vmatprep.subr.mxu0 0.0
    %419 = vmatpush1.msra.mxu0 %v379
    %420 = vmatprep.subr.mxu0 0.0
    %421 = vmatpush1.msra.mxu0 %v378
    %422 = vmatprep.subr.mxu0 0.0
    %423 = vmatpush1.msra.mxu0 %v377
    %424 = vmatprep.subr.mxu0 0.0
    %425 = vmatpush1.msra.mxu0 %v376
    %426 = vmatprep.subr.mxu0 0.0
    %427 = vmatpush1.msra.mxu0 %v375
    %428 = vmatprep.subr.mxu0 0.0
    %429 = vmatpush1.msra.mxu0 %v374
    %430 = vmatprep.subr.mxu0 0.0
    %431 = vmatpush1.msra.mxu0 %v373
    %432 = vmatprep.subr.mxu0 0.0
    %433 = vmatpush1.msra.mxu0 %v372
    %434 = vmatprep.subr.mxu0 0.0
    %435 = vmatpush2.msra.mxu0 0.0
    %436 = vmatprep.subr.mxu0 0.0
    %437 = vmatpush2.msra.mxu0 0.0
    %438 = vmatprep.subr.mxu0 0.0
    %439 = vmatpush2.msra.mxu0 0.0
    %440 = vmatprep.subr.mxu0 0.0
    %441 = vmatpush2.msra.mxu0 0.0
    %442 = vmatprep.subr.mxu0 0.0
    %443 = vmatpush2.msra.mxu0 0.0
    %444 = vmatprep.subr.mxu0 0.0
    %445 = vmatpush2.msra.mxu0 0.0
    %446 = vmatprep.subr.mxu0 0.0
    %447 = vmatpush2.msra.mxu0 0.0
    %448 = vmatprep.subr.mxu0 0.0
    %449 = vmatpush2.msra.mxu0 0.0
    %450 = vmatprep.subr.mxu0 0.0
    %451 = vmatpush2.msra.mxu0 0.0
    %452 = vmatprep.subr.mxu0 0.0
    %453 = vmatpush2.msra.mxu0 0.0
    %454 = vmatprep.subr.mxu0 0.0
    %455 = vmatpush2.msra.mxu0 0.0
    %456 = vmatprep.subr.mxu0 0.0
    %457 = vmatpush2.msra.mxu0 0.0
    %458 = vmatprep.subr.mxu0 0.0
    %459 = vmatpush2.msra.mxu0 0.0
    %460 = vmatprep.subr.mxu0 0.0
    %461 = vmatpush2.msra.mxu0 0.0
    %462 = vmatprep.subr.mxu0 0.0
    %463 = vmatpush2.msra.mxu0 0.0
    %464 = vmatprep.subr.mxu0 0.0
    %465 = vmatpush2.msra.mxu0 0.0
    %466 = vmatprep.mubr.f32.mxu0 0.0
    %467 = vmatmul.mubr.f32.gmra.mxu0 %v396
    %v468 = vpop.f32.mrf.mxu0
    %v469 = vadd.f32 %v390, %v468
    %v470 = vpop.f32.mrf.mxu0
    %471 = vdwg.mxu0
    %v472 = vmax.f32 %v469, 0.0
    %v473 = vld [vmem:[%s5] sm:$0x1]
    %s474 = sld [smem:[#allocation3]]
    %v475 = vstv %s474
    %476 = vmatprep.subr.mxu0 0.0
    %477 = vmatpush1.xpose.msra.mxu0 0.0
    %478 = vmatprep.subr.mxu0 0.0
    %479 = vmatpush1.xpose.msra.mxu0 0.0
    %480 = vmatprep.subr.mxu0 0.0
    %481 = vmatpush1.xpose.msra.mxu0 0.0
    %482 = vmatprep.subr.mxu0 0.0
    %483 = vmatpush1.xpose.msra.mxu0 0.0
    %484 = vmatprep.subr.mxu0 0.0
    %485 = vmatpush1.xpose.msra.mxu0 0.0
    %486 = vmatprep.subr.mxu0 0.0
    %487 = vmatpush1.xpose.msra.mxu0 0.0
    %488 = vmatprep.subr.mxu0 0.0
    %489 = vmatpush1.xpose.msra.mxu0 0.0
    %490 = vmatprep.subr.mxu0 0.0
    %491 = vmatpush1.xpose.msra.mxu0 0.0
    %492 = vmatprep.subr.mxu0 0.0
    %493 = vmatpush1.xpose.msra.mxu0 0.0
    %494 = vmatprep.subr.mxu0 0.0
    %495 = vmatpush1.xpose.msra.mxu0 0.0
    %496 = vmatprep.subr.mxu0 0.0
    %497 = vmatpush1.xpose.msra.mxu0 0.0
    %498 = vmatprep.subr.mxu0 0.0
    %499 = vmatpush1.xpose.msra.mxu0 0.0
    %500 = vmatprep.subr.mxu0 0.0
    %501 = vmatpush1.xpose.msra.mxu0 0.0
    %502 = vmatprep.subr.mxu0 0.0
    %503 = vmatpush1.xpose.msra.mxu0 0.0
    %504 = vmatprep.subr.mxu0 0.0
    %505 = vmatpush1.xpose.msra.mxu0 0.0
    %506 = vmatprep.subr.mxu0 0.0
    %507 = vmatpush1.xpose.msra.mxu0 %v472
    %508 = vmatprep.subr.mxu0 0.0
    %509 = vmatpush2.xpose.msra.mxu0 0.0
    %510 = vmatprep.subr.mxu0 0.0
    %511 = vmatpush2.xpose.msra.mxu0 0.0
    %512 = vmatprep.subr.mxu0 0.0
    %513 = vmatpush2.xpose.msra.mxu0 0.0
    %514 = vmatprep.subr.mxu0 0.0
    %515 = vmatpush2.xpose.msra.mxu0 0.0
    %516 = vmatprep.subr.mxu0 0.0
    %517 = vmatpush2.xpose.msra.mxu0 0.0
    %518 = vmatprep.subr.mxu0 0.0
    %519 = vmatpush2.xpose.msra.mxu0 0.0
    %520 = vmatprep.subr.mxu0 0.0
    %521 = vmatpush2.xpose.msra.mxu0 0.0
    %522 = vmatprep.subr.mxu0 0.0
    %523 = vmatpush2.xpose.msra.mxu0 0.0
    %524 = vmatprep.subr.mxu0 0.0
    %525 = vmatpush2.xpose.msra.mxu0 0.0
    %526 = vmatprep.subr.mxu0 0.0
    %527 = vmatpush2.xpose.msra.mxu0 0.0
    %528 = vmatprep.subr.mxu0 0.0
    %529 = vmatpush2.xpose.msra.mxu0 0.0
    %530 = vmatprep.subr.mxu0 0.0
    %531 = vmatpush2.xpose.msra.mxu0 0.0
    %532 = vmatprep.subr.mxu0 0.0
    %533 = vmatpush2.xpose.msra.mxu0 0.0
    %534 = vmatprep.subr.mxu0 0.0
    %535 = vmatpush2.xpose.msra.mxu0 0.0
    %536 = vmatprep.subr.mxu0 0.0
    %537 = vmatpush2.xpose.msra.mxu0 0.0
    %538 = vmatprep.subr.mxu0 0.0
    %539 = vmatpush2.xpose.msra.mxu0 0.0
    %540 = vmatprep.mubr.f32.mxu0 0.0
    %541 = vmatmul.mubr.f32.gmra.mxu0 %v473
    %v542 = vpop.f32.mrf.mxu0
    %v543 = vadd.f32 %v475, %v542
    %v544 = vpop.f32.mrf.mxu0
    %545 = vdwg.mxu0
    %v546 = vtanh.pop %v543
    %vm547 = vcmask 8192
    %548 = vst.msk [vmem:[#allocation4] sm:$0x1] %vm547, %v546
    // Predicated region
    $region30: #{tpu_custom_call.1} parent=1 // pred_check
      _
    $region31: #{tpu_custom_call.1} parent=1 // pred_check_branch
      %550 = sbr.rel (0) target = $region33
    $region32: #{tpu_custom_call.1} parent=1 // pred_region
      %s552 = ssub.s32 16, 16
      %553 = vsyncadd [#allocation5], %s552
      %s555 = sshll.u32 [#allocation4], 4
      %s556 = int_to_ptr.vmem [resolvable:$true] %s555
      %558 = dma.vmem_to_hbm [thread:$0]  %s556, 16, %s7, [#allocation5]
    $region33: #{tpu_custom_call.1} parent=1 // pred_fallthru
      _
    // Predicated region
    $region34: #{tpu_custom_call.1} parent=1 // pred_check
      _
    $region35: #{tpu_custom_call.1} parent=1 // pred_check_branch
      %560 = sbr.rel (0) target = $region37
    $region36: #{tpu_custom_call.1} parent=1 // pred_region
      %561 = dma.done [#allocation5], 16
    $region37: #{tpu_custom_call.1} parent=1 // pred_fallthru
      _
    %562 = vsyncpa [#allocation5], 1

</llo_original>
